<compile_context>
chip_gen: v7x
topology: tpu7x:2x2x1
jax: 0.10.0
libtpu: 0.0.40
codegen_flags: <defaults>
</compile_context>

<pallas_src>
import numpy as np
import jax
import jax.numpy as jnp
from jax.experimental import pallas as pl
from jax.experimental.pallas import tpu as pltpu


def _round_up(x, m):
    return (x + m - 1) // m * m


def _make_kernel(tb, t_pos, feat_pad):
    def kernel(xw_ref, cw_ref, cb_ref, mask_ref, w1_ref, b1_ref, w2_ref, b2_ref,
               out_ref):
        # Fused conv over all filter widths: ONE MXU matmul on the host-built
        # im2col slab (tb*t_pos, Kmax*in_dim) @ (Kmax*in_dim, feat_pad).
        acc = jnp.dot(xw_ref[...], cw_ref[...],
                      preferred_element_type=jnp.float32)   # (tb*t_pos, Fp) f32
        acc = jnp.maximum(acc + cb_ref[...], 0.0)            # conv bias + ReLU

        # Global max-pool over time; additive -1e30 mask removes positions that
        # are out of range for a given filter width (padded channels stay 0).
        acc = acc.reshape(tb, t_pos, feat_pad) + mask_ref[...]
        feat = jnp.max(acc, axis=1)                           # (tb, Fp)

        # TODO(synk): nn.Dropout(0.1) is treated as inference-mode identity (no RNG mask).
        h = jnp.dot(feat.astype(w1_ref.dtype), w1_ref[...],
                    preferred_element_type=jnp.float32) + b1_ref[...]
        h = jnp.maximum(h, 0.0)                               # ReLU(fc1)
        y = jnp.dot(h.astype(w2_ref.dtype), w2_ref[...],
                    preferred_element_type=jnp.float32) + b2_ref[...]
        out_ref[...] = y.astype(out_ref.dtype)                # (tb, Op) lane-dense

    return kernel


def cnn_forward(x, conv_ws, conv_bs, fc1_w, fc1_b, fc2_w, fc2_b, *,
                Ks, n_kernel, out_dim=None, block_b=512,
                compute_dtype=jnp.bfloat16):
    """x: (N, n_image, in_dim). Returns (N, out_dim) float32."""
    N, n_image, in_dim = x.shape
    if out_dim is None:
        out_dim = in_dim
    Ks = tuple(Ks)
    Kmax, Kmin = max(Ks), min(Ks)
    feat_dim = len(Ks) * n_kernel

    # lane-dense padded channel/output widths
    feat_pad = _round_up(feat_dim, 128)
    out_pad = _round_up(out_dim, 128)
    C = Kmax * in_dim                         # im2col contraction width (=128 here)

    # time positions (sublane multiple) and padded time extent for the windows
    t_pos = _round_up(n_image - Kmin + 1, 8)
    t_pad = t_pos + Kmax - 1

    # batch tile: multiple of 8, capped at block_b; prefer >=2 grid steps when
    # the batch allows it (v7x megacore), pad batch to a tile multiple.
    n_rows = _round_up(N, 8)
    tb = min(_round_up(block_b, 8), n_rows)
    if n_rows > 8:
        tb = min(tb, max(8, _round_up(-(-n_rows // 2), 8)))
    n_pad = _round_up(N, tb)

    # ---- host-side prep (tiny, once per call) -----------------------------
    # im2col: window at time t holds taps t..t+Kmax-1 flattened on the lane axis.
    x_p = jnp.pad(x, ((0, n_pad - N), (0, t_pad - n_image), (0, 0)))
    x_p = x_p.astype(compute_dtype)
    xw = jnp.concatenate([x_p[:, k:k + t_pos, :] for k in range(Kmax)], axis=-1)
    xw = xw.reshape(n_pad * t_pos, C)                         # (n_pad*t_pos, C) bf16

    # fuse the filter banks: zero-pad taps to Kmax, concat along out-channels,
    # then zero-pad channels to feat_pad so every vreg downstream is lane-dense.
    w_cols, b_cols = [], []
    for w, b, K in zip(conv_ws, conv_bs, Ks):
        w = jnp.pad(w, ((0, Kmax - K), (0, 0), (0, 0)))       # (Kmax, in_dim, n_kernel)
        w_cols.append(w.reshape(C, n_kernel))
        b_cols.append(b.reshape(1, n_kernel))
    conv_w = jnp.concatenate(w_cols, axis=1)                  # (C, F)
    conv_w = jnp.pad(conv_w, ((0, 0), (0, feat_pad - feat_dim))).astype(compute_dtype)
    conv_b = jnp.concatenate(b_cols, axis=1)
    conv_b = jnp.pad(conv_b, ((0, 0), (0, feat_pad - feat_dim))).astype(jnp.float32)

    # additive mask: -1e30 at time positions invalid for each real filter width;
    # padded channel columns stay 0 so they pool to exactly 0.
    mask = np.zeros((t_pos, feat_pad), dtype=np.float32)
    for i, K in enumerate(Ks):
        mask[n_image - K + 1:, i * n_kernel:(i + 1) * n_kernel] = -1e30
    mask = jnp.asarray(mask)

    # fc layers zero-padded to lane-dense shapes (padded rows/cols contribute 0).
    fc1_wp = jnp.pad(fc1_w, ((0, feat_pad - feat_dim), (0, feat_pad - feat_dim)))
    fc1_bp = jnp.pad(fc1_b.reshape(1, feat_dim), ((0, 0), (0, feat_pad - feat_dim)))
    fc2_wp = jnp.pad(fc2_w, ((0, feat_pad - feat_dim), (0, out_pad - out_dim)))
    fc2_bp = jnp.pad(fc2_b.reshape(1, out_dim), ((0, 0), (0, out_pad - out_dim)))
    fc1_wp = fc1_wp.astype(compute_dtype)
    fc2_wp = fc2_wp.astype(compute_dtype)
    fc1_bp = fc1_bp.astype(jnp.float32)
    fc2_bp = fc2_bp.astype(jnp.float32)

    kernel = _make_kernel(tb, t_pos, feat_pad)

    def const2d(shape):
        return pl.BlockSpec(shape, lambda n: (0, 0))

    out = pl.pallas_call(
        kernel,
        grid=(n_pad // tb,),
        in_specs=[
            pl.BlockSpec((tb * t_pos, C), lambda n: (n, 0)),  # im2col slab
            const2d((C, feat_pad)),                           # fused conv weight
            const2d((1, feat_pad)),                           # fused conv bias
            const2d((t_pos, feat_pad)),                       # max-pool validity mask
            const2d((feat_pad, feat_pad)),                    # fc1_w
            const2d((1, feat_pad)),                           # fc1_b
            const2d((feat_pad, out_pad)),                     # fc2_w
            const2d((1, out_pad)),                            # fc2_b
        ],
        out_specs=pl.BlockSpec((tb, out_pad), lambda n: (n, 0)),
        out_shape=jax.ShapeDtypeStruct((n_pad, out_pad), jnp.float32),
        compiler_params=pltpu.CompilerParams(dimension_semantics=("parallel",)),
    )(xw, conv_w, conv_b, mask, fc1_wp, fc1_bp, fc2_wp, fc2_bp)
    return out[:N, :out_dim]


def cnn_reference(x, conv_ws, conv_bs, fc1_w, fc1_b, fc2_w, fc2_b, Ks,
                  cast_dtype=None):
    """Pure-JAX reference matching the PyTorch forward (eval mode).

    If cast_dtype is given, matmul operands are rounded to it (mirrors the
    kernel's bf16 operand path) while the math itself stays f32.
    """
    c = (lambda a: a) if cast_dtype is None else (
        lambda a: a.astype(cast_dtype).astype(jnp.float32))
    x = c(x)
    N, T, D = x.shape
    pooled = []
    for i, K in enumerate(Ks):
        t_out = T - K + 1
        w = c(conv_ws[i])
        acc = jnp.zeros((N, t_out, w.shape[-1]), jnp.float32)
        for k in range(K):
            acc = acc + jnp.einsum("ntd,dc->ntc", x[:, k:k + t_out, :], w[k])
        acc = jax.nn.relu(acc + conv_bs[i])
        pooled.append(jnp.max(acc, axis=1))
    feat = jnp.concatenate(pooled, axis=1)
    h = jax.nn.relu(c(feat) @ c(fc1_w) + fc1_b)
    return c(h) @ c(fc2_w) + fc2_b


if __name__ == "__main__":
    # Small shapes consistent with the module: batch=2, set of 8 items, dim 32.
    N, n_image, in_dim = 2, 8, 32
    n_kernel = 16
    Ks = (2, 3, 4)
    out_dim = in_dim                 # default: out_dim = in_dim
    F_dim = len(Ks) * n_kernel       # 48

    key = jax.random.PRNGKey(0)
    keys = jax.random.split(key, 2 * len(Ks) + 5)

    x = jax.random.normal(keys[0], (N, n_image, in_dim), jnp.float32)
    conv_ws = [0.1 * jax.random.normal(keys[1 + i], (K, in_dim, n_kernel), jnp.float32)
               for i, K in enumerate(Ks)]
    conv_bs = [0.1 * jax.random.normal(keys[1 + len(Ks) + i], (1, n_kernel), jnp.float32)
               for i in range(len(Ks))]
    fc1_w = 0.1 * jax.random.normal(keys[-4], (F_dim, F_dim), jnp.float32)
    fc1_b = 0.1 * jax.random.normal(keys[-3], (1, F_dim), jnp.float32)
    fc2_w = 0.1 * jax.random.normal(keys[-2], (F_dim, out_dim), jnp.float32)
    fc2_b = 0.1 * jax.random.normal(keys[-1], (1, out_dim), jnp.float32)

    y = cnn_forward(x, conv_ws, conv_bs, fc1_w, fc1_b, fc2_w, fc2_b,
                    Ks=Ks, n_kernel=n_kernel, out_dim=out_dim)
    y = jax.block_until_ready(y)
    assert y.shape == (N, out_dim), y.shape

    # tight check vs a reference using the same bf16-rounded operands
    y_bf = cnn_reference(x, conv_ws, conv_bs, fc1_w, fc1_b, fc2_w, fc2_b, Ks,
                         cast_dtype=jnp.bfloat16)
    assert jnp.allclose(y, y_bf, rtol=1e-2, atol=1e-2), \
        f"max abs err (bf16 ref) = {jnp.max(jnp.abs(y - y_bf))}"

    # looser check vs the pure-f32 reference (semantic fidelity)
    y_f32 = cnn_reference(x, conv_ws, conv_bs, fc1_w, fc1_b, fc2_w, fc2_b, Ks)
    assert jnp.allclose(y, y_f32, rtol=5e-2, atol=5e-2), \
        f"max abs err (f32 ref) = {jnp.max(jnp.abs(y - y_f32))}"

    # exercise a multi-step grid (batch tiling + ragged batch padding)
    N2 = 37
    x2 = jax.random.normal(jax.random.PRNGKey(1), (N2, n_image, in_dim), jnp.float32)
    y2 = cnn_forward(x2, conv_ws, conv_bs, fc1_w, fc1_b, fc2_w, fc2_b,
                     Ks=Ks, n_kernel=n_kernel, out_dim=out_dim, block_b=16)
    y2 = jax.block_until_ready(y2)
    y2_ref = cnn_reference(x2, conv_ws, conv_bs, fc1_w, fc1_b, fc2_w, fc2_b, Ks,
                           cast_dtype=jnp.bfloat16)
    assert y2.shape == (N2, out_dim)
    assert jnp.allclose(y2, y2_ref, rtol=1e-2, atol=1e-2), \
        f"max abs err (batch=37) = {jnp.max(jnp.abs(y2 - y2_ref))}"

    # larger batch with the default tile: >=2 grid steps, still lane-dense
    N3 = 300
    x3 = jax.random.normal(jax.random.PRNGKey(2), (N3, n_image, in_dim), jnp.float32)
    y3 = cnn_forward(x3, conv_ws, conv_bs, fc1_w, fc1_b, fc2_w, fc2_b,
                     Ks=Ks, n_kernel=n_kernel, out_dim=out_dim)
    y3 = jax.block_until_ready(y3)
    y3_ref = cnn_reference(x3, conv_ws, conv_bs, fc1_w, fc1_b, fc2_w, fc2_b, Ks,
                           cast_dtype=jnp.bfloat16)
    assert y3.shape == (N3, out_dim)
    assert jnp.allclose(y3, y3_ref, rtol=1e-2, atol=1e-2), \
        f"max abs err (batch=300) = {jnp.max(jnp.abs(y3 - y3_ref))}"

    print("KERNEL_OK")
</pallas_src>

<mosaic_0001>
module attributes {stable_mosaic.version = 11 : i64} {
  func.func @kernel(%arg0: i32, %arg1: memref<64x128xbf16, #tpu.memory_space<vmem>>, %arg2: memref<128x128xbf16, #tpu.memory_space<vmem>>, %arg3: memref<1x128xf32, #tpu.memory_space<vmem>>, %arg4: memref<8x128xf32, #tpu.memory_space<vmem>>, %arg5: memref<128x128xbf16, #tpu.memory_space<vmem>>, %arg6: memref<1x128xf32, #tpu.memory_space<vmem>>, %arg7: memref<128x128xbf16, #tpu.memory_space<vmem>>, %arg8: memref<1x128xf32, #tpu.memory_space<vmem>>, %arg9: memref<8x128xf32, #tpu.memory_space<vmem>>) attributes {dimension_semantics = [#tpu.dimension_semantics<parallel>], iteration_bounds = array<i64: 1>, scalar_prefetch = 0 : i64, scratch_operands = 0 : i64, tpu.core_type = #tpu.core_type<tc>, window_params = [{transform_indices = @transform_0, window_bounds = array<i64: 64, 128>}, {pipeline_mode = #tpu.pipeline_mode<synchronous>, transform_indices = @transform_1, window_bounds = array<i64: 128, 128>}, {pipeline_mode = #tpu.pipeline_mode<synchronous>, transform_indices = @transform_2, window_bounds = array<i64: 1, 128>}, {pipeline_mode = #tpu.pipeline_mode<synchronous>, transform_indices = @transform_3, window_bounds = array<i64: 8, 128>}, {pipeline_mode = #tpu.pipeline_mode<synchronous>, transform_indices = @transform_4, window_bounds = array<i64: 128, 128>}, {pipeline_mode = #tpu.pipeline_mode<synchronous>, transform_indices = @transform_5, window_bounds = array<i64: 1, 128>}, {pipeline_mode = #tpu.pipeline_mode<synchronous>, transform_indices = @transform_6, window_bounds = array<i64: 128, 128>}, {pipeline_mode = #tpu.pipeline_mode<synchronous>, transform_indices = @transform_7, window_bounds = array<i64: 1, 128>}, {transform_indices = @transform_8, window_bounds = array<i64: 8, 128>}]} {
    %c0 = arith.constant 0 : index
    %c0_0 = arith.constant 0 : index
    %0 = vector.load %arg1[%c0, %c0_0] : memref<64x128xbf16, #tpu.memory_space<vmem>>, vector<64x128xbf16>
    %c0_1 = arith.constant 0 : index
    %c0_2 = arith.constant 0 : index
    %1 = vector.load %arg2[%c0_1, %c0_2] : memref<128x128xbf16, #tpu.memory_space<vmem>>, vector<128x128xbf16>
    %cst = arith.constant dense<0.000000e+00> : vector<64x128xf32>
    %2 = tpu.matmul %0, %1, %cst {dimension_numbers = #tpu.dot_dimension_numbers<[1], [0], [0], [1], [0, 0, 1, 1], [], []>} : vector<64x128xbf16>, vector<128x128xbf16>, vector<64x128xf32> -> vector<64x128xf32>
    %c0_3 = arith.constant 0 : index
    %c0_4 = arith.constant 0 : index
    %3 = vector.load %arg3[%c0_3, %c0_4] : memref<1x128xf32, #tpu.memory_space<vmem>>, vector<1x128xf32>
    %4 = vector.broadcast %3 : vector<1x128xf32> to vector<64x128xf32>
    %5 = arith.addf %2, %4 : vector<64x128xf32>
    %cst_5 = arith.constant 0.000000e+00 : f32
    %6 = vector.broadcast %cst_5 : f32 to vector<64x128xf32>
    %7 = arith.maximumf %5, %6 : vector<64x128xf32>
    %8 = vector.shape_cast %7 : vector<64x128xf32> to vector<8x8x128xf32>
    %c0_6 = arith.constant 0 : index
    %c0_7 = arith.constant 0 : index
    %9 = vector.load %arg4[%c0_6, %c0_7] : memref<8x128xf32, #tpu.memory_space<vmem>>, vector<8x128xf32>
    %10 = vector.shape_cast %9 : vector<8x128xf32> to vector<1x8x128xf32>
    %11 = vector.broadcast %10 : vector<1x8x128xf32> to vector<8x8x128xf32>
    %12 = arith.addf %8, %11 : vector<8x8x128xf32>
    %cst_8 = arith.constant dense<0xFF800000> : vector<8x128xf32>
    %13 = vector.multi_reduction <maximumf>, %12, %cst_8 [1] : vector<8x8x128xf32> to vector<8x128xf32>
    %14 = arith.truncf %13 : vector<8x128xf32> to vector<8x128xbf16>
    %c0_9 = arith.constant 0 : index
    %c0_10 = arith.constant 0 : index
    %15 = vector.load %arg5[%c0_9, %c0_10] : memref<128x128xbf16, #tpu.memory_space<vmem>>, vector<128x128xbf16>
    %cst_11 = arith.constant dense<0.000000e+00> : vector<8x128xf32>
    %16 = tpu.matmul %14, %15, %cst_11 {dimension_numbers = #tpu.dot_dimension_numbers<[1], [0], [0], [1], [0, 0, 1, 1], [], []>} : vector<8x128xbf16>, vector<128x128xbf16>, vector<8x128xf32> -> vector<8x128xf32>
    %c0_12 = arith.constant 0 : index
    %c0_13 = arith.constant 0 : index
    %17 = vector.load %arg6[%c0_12, %c0_13] : memref<1x128xf32, #tpu.memory_space<vmem>>, vector<1x128xf32>
    %18 = vector.broadcast %17 : vector<1x128xf32> to vector<8x128xf32>
    %19 = arith.addf %16, %18 : vector<8x128xf32>
    %cst_14 = arith.constant 0.000000e+00 : f32
    %20 = vector.broadcast %cst_14 : f32 to vector<8x128xf32>
    %21 = arith.maximumf %19, %20 : vector<8x128xf32>
    %22 = arith.truncf %21 : vector<8x128xf32> to vector<8x128xbf16>
    %c0_15 = arith.constant 0 : index
    %c0_16 = arith.constant 0 : index
    %23 = vector.load %arg7[%c0_15, %c0_16] : memref<128x128xbf16, #tpu.memory_space<vmem>>, vector<128x128xbf16>
    %cst_17 = arith.constant dense<0.000000e+00> : vector<8x128xf32>
    %24 = tpu.matmul %22, %23, %cst_17 {dimension_numbers = #tpu.dot_dimension_numbers<[1], [0], [0], [1], [0, 0, 1, 1], [], []>} : vector<8x128xbf16>, vector<128x128xbf16>, vector<8x128xf32> -> vector<8x128xf32>
    %c0_18 = arith.constant 0 : index
    %c0_19 = arith.constant 0 : index
    %25 = vector.load %arg8[%c0_18, %c0_19] : memref<1x128xf32, #tpu.memory_space<vmem>>, vector<1x128xf32>
    %26 = vector.broadcast %25 : vector<1x128xf32> to vector<8x128xf32>
    %27 = arith.addf %24, %26 : vector<8x128xf32>
    %c0_20 = arith.constant 0 : index
    %c0_21 = arith.constant 0 : index
    %28 = vector.load %arg9[%c0_20, %c0_21] : memref<8x128xf32, #tpu.memory_space<vmem>>, vector<8x128xf32>
    tpu.vector_store %arg9[%c0_20, %c0_21], %27 {strides = array<i32>} : memref<8x128xf32, #tpu.memory_space<vmem>>, vector<8x128xf32>,
    return
  }
  func.func @transform_0(%arg0: i32) -> (i32, i32) {
    %c0_i32 = arith.constant 0 : i32
    %c0_i32_0 = arith.constant 0 : i32
    return %arg0, %c0_i32 : i32, i32
  }
  func.func @transform_1(%arg0: i32) -> (i32, i32) {
    %c0_i32 = arith.constant 0 : i32
    %c0_i32_0 = arith.constant 0 : i32
    %c0_i32_1 = arith.constant 0 : i32
    return %c0_i32, %c0_i32_0 : i32, i32
  }
  func.func @transform_2(%arg0: i32) -> (i32, i32) {
    %c0_i32 = arith.constant 0 : i32
    %c0_i32_0 = arith.constant 0 : i32
    %c0_i32_1 = arith.constant 0 : i32
    return %c0_i32, %c0_i32_0 : i32, i32
  }
  func.func @transform_3(%arg0: i32) -> (i32, i32) {
    %c0_i32 = arith.constant 0 : i32
    %c0_i32_0 = arith.constant 0 : i32
    %c0_i32_1 = arith.constant 0 : i32
    return %c0_i32, %c0_i32_0 : i32, i32
  }
  func.func @transform_4(%arg0: i32) -> (i32, i32) {
    %c0_i32 = arith.constant 0 : i32
    %c0_i32_0 = arith.constant 0 : i32
    %c0_i32_1 = arith.constant 0 : i32
    return %c0_i32, %c0_i32_0 : i32, i32
  }
  func.func @transform_5(%arg0: i32) -> (i32, i32) {
    %c0_i32 = arith.constant 0 : i32
    %c0_i32_0 = arith.constant 0 : i32
    %c0_i32_1 = arith.constant 0 : i32
    return %c0_i32, %c0_i32_0 : i32, i32
  }
  func.func @transform_6(%arg0: i32) -> (i32, i32) {
    %c0_i32 = arith.constant 0 : i32
    %c0_i32_0 = arith.constant 0 : i32
    %c0_i32_1 = arith.constant 0 : i32
    return %c0_i32, %c0_i32_0 : i32, i32
  }
  func.func @transform_7(%arg0: i32) -> (i32, i32) {
    %c0_i32 = arith.constant 0 : i32
    %c0_i32_0 = arith.constant 0 : i32
    %c0_i32_1 = arith.constant 0 : i32
    return %c0_i32, %c0_i32_0 : i32, i32
  }
  func.func @transform_8(%arg0: i32) -> (i32, i32) {
    %c0_i32 = arith.constant 0 : i32
    %c0_i32_0 = arith.constant 0 : i32
    return %arg0, %c0_i32 : i32, i32
  }
}

</mosaic_0001>

<llo_original>
// kernel: tpu_custom_call.1
$region0: #{tpu_custom_call.1}
  #allocation0 [shape = 'u32[]', space=smem, size = 0x4, offset = 0x4, fixed_abs, tag = 'smem constant byte address 0x4 - core index']
  #allocation1 [shape = 'u32[144,128]{1,0:T(1,128)}', space=vmem, size = 0x12000, scoped, tag = 'internal scratch']
  %s0 = inlined_call_operand.hbm [shape: bf16[64,128], index: 0, kind: input, shape index: {}]
  %s1 = inlined_call_operand.hbm [shape: bf16[128,128], index: 1, kind: input, shape index: {}]
  %s2 = inlined_call_operand.vmem [shape: f32[1,128], index: 2, kind: input, shape index: {}]
  %s3 = inlined_call_operand.vmem [shape: f32[8,128], index: 3, kind: input, shape index: {}]
  %s4 = inlined_call_operand.hbm [shape: bf16[128,128], index: 4, kind: input, shape index: {}]
  %s5 = inlined_call_operand.vmem [shape: f32[1,128], index: 5, kind: input, shape index: {}]
  %s6 = inlined_call_operand.hbm [shape: bf16[128,128], index: 6, kind: input, shape index: {}]
  %s7 = inlined_call_operand.vmem [shape: f32[1,128], index: 7, kind: input, shape index: {}]
  %s8 = inlined_call_operand.hbm [shape: f32[8,128], index: 8, kind: output, shape index: {}]
  %s9 = sld [smem:[#allocation0]]
  $region58: #{tpu_custom_call.1} parent=0
    _
  %s11 = ssub.s32 1, %s9
  %s12 = scalar_select 0, %s11, %s9
  $region1: #{tpu_custom_call.1} parent=0
    #allocation2 [shape = 'u8[16384]{0}', space=vmem, size = 0x4000, scoped, tag = 'input window, operand 0, single buffered']
    #allocation3 [shape = 's32[1]{0}', space=sflag, size = 0x4, scoped, tag = 'scoped memory for tpu_custom_call.1']
    #allocation4 [shape = 's32[1]{0}', space=sflag, size = 0x4, scoped, tag = 'scoped memory for tpu_custom_call.1']
    #allocation5 [shape = 'u8[32768]{0}', space=vmem, size = 0x8000, scoped, tag = 'input window, operand 1, single buffered']
    #allocation6 [shape = 's32[1]{0}', space=sflag, size = 0x4, scoped, tag = 'scoped memory for tpu_custom_call.1']
    #allocation7 [shape = 'u8[32768]{0}', space=vmem, size = 0x8000, scoped, tag = 'input window, operand 4, single buffered']
    #allocation8 [shape = 'u8[32768]{0}', space=vmem, size = 0x8000, scoped, tag = 'input window, operand 6, single buffered']
    #allocation9 [shape = 's32[1]{0}', space=sflag, size = 0x4, scoped, tag = 'scoped memory for tpu_custom_call.1']
    #allocation10 [shape = 'u8[4096]{0}', space=vmem, size = 0x1000, scoped, tag = 'output window, operand 0, single buffered']
    %13 = vsyncpa [#allocation3], 0
    %14 = vsyncpa [#allocation6], 0
    %15 = vsyncpa [#allocation9], 0
    %16 = vsyncpa [#allocation4], 0
    // Predicated region
    $region2: #{tpu_custom_call.1} parent=1 // pred_check
      _
    $region3: #{tpu_custom_call.1} parent=1 // pred_check_branch
      %18 = sbr.rel (0) target = $region5
    $region4: #{tpu_custom_call.1} parent=1 // pred_region
      %s20 = ssub.s32 512, 512
      %21 = vsyncadd [#allocation3], %s20
      %s22 = sshll.u32 [#allocation2], 4
      %s23 = int_to_ptr.vmem [resolvable:$true] %s22
      %28 = dma.hbm_to_vmem [thread:$0]  %s0, 512, %s23, [#allocation3], 64, 64, 4
    $region5: #{tpu_custom_call.1} parent=1 // pred_fallthru
      _
    // Predicated region
    $region6: #{tpu_custom_call.1} parent=1 // pred_check
      _
    $region7: #{tpu_custom_call.1} parent=1 // pred_check_branch
      %30 = sbr.rel (0) target = $region9
    $region8: #{tpu_custom_call.1} parent=1 // pred_region
      %s32 = ssub.s32 1024, 1024
      %33 = vsyncadd [#allocation6], %s32
      %s34 = sshll.u32 [#allocation5], 4
      %s35 = int_to_ptr.vmem [resolvable:$true] %s34
      %40 = dma.hbm_to_vmem [thread:$0]  %s1, 1024, %s35, [#allocation6], 64, 64, 4
    $region9: #{tpu_custom_call.1} parent=1 // pred_fallthru
      _
    // Predicated region
    $region10: #{tpu_custom_call.1} parent=1 // pred_check
      _
    $region11: #{tpu_custom_call.1} parent=1 // pred_check_branch
      %42 = sbr.rel (0) target = $region13
    $region12: #{tpu_custom_call.1} parent=1 // pred_region
      _
    $region13: #{tpu_custom_call.1} parent=1 // pred_fallthru
      _
    // Predicated region
    $region14: #{tpu_custom_call.1} parent=1 // pred_check
      _
    $region15: #{tpu_custom_call.1} parent=1 // pred_check_branch
      %44 = sbr.rel (0) target = $region17
    $region16: #{tpu_custom_call.1} parent=1 // pred_region
      _
    $region17: #{tpu_custom_call.1} parent=1 // pred_fallthru
      _
    // Predicated region
    $region18: #{tpu_custom_call.1} parent=1 // pred_check
      _
    $region19: #{tpu_custom_call.1} parent=1 // pred_check_branch
      %46 = sbr.rel (0) target = $region21
    $region20: #{tpu_custom_call.1} parent=1 // pred_region
      %s48 = ssub.s32 1024, 1024
      %49 = vsyncadd [#allocation6], %s48
      %s50 = sshll.u32 [#allocation7], 4
      %s51 = int_to_ptr.vmem [resolvable:$true] %s50
      %56 = dma.hbm_to_vmem [thread:$0]  %s4, 1024, %s51, [#allocation6], 64, 64, 4
    $region21: #{tpu_custom_call.1} parent=1 // pred_fallthru
      _
    // Predicated region
    $region22: #{tpu_custom_call.1} parent=1 // pred_check
      _
    $region23: #{tpu_custom_call.1} parent=1 // pred_check_branch
      %58 = sbr.rel (0) target = $region25
    $region24: #{tpu_custom_call.1} parent=1 // pred_region
      _
    $region25: #{tpu_custom_call.1} parent=1 // pred_fallthru
      _
    // Predicated region
    $region26: #{tpu_custom_call.1} parent=1 // pred_check
      _
    $region27: #{tpu_custom_call.1} parent=1 // pred_check_branch
      %60 = sbr.rel (0) target = $region29
    $region28: #{tpu_custom_call.1} parent=1 // pred_region
      %s62 = ssub.s32 1024, 1024
      %63 = vsyncadd [#allocation9], %s62
      %s64 = sshll.u32 [#allocation8], 4
      %s65 = int_to_ptr.vmem [resolvable:$true] %s64
      %70 = dma.hbm_to_vmem [thread:$0]  %s6, 1024, %s65, [#allocation9], 64, 64, 4
    $region29: #{tpu_custom_call.1} parent=1 // pred_fallthru
      _
    // Predicated region
    $region30: #{tpu_custom_call.1} parent=1 // pred_check
      _
    $region31: #{tpu_custom_call.1} parent=1 // pred_check_branch
      %72 = sbr.rel (0) target = $region33
    $region32: #{tpu_custom_call.1} parent=1 // pred_region
      _
    $region33: #{tpu_custom_call.1} parent=1 // pred_fallthru
      _
    // Predicated region
    $region34: #{tpu_custom_call.1} parent=1 // pred_check
      _
    $region35: #{tpu_custom_call.1} parent=1 // pred_check_branch
      %74 = sbr.rel (0) target = $region37
    $region36: #{tpu_custom_call.1} parent=1 // pred_region
      %75 = dma.done [#allocation3], 512
    $region37: #{tpu_custom_call.1} parent=1 // pred_fallthru
      _
    // Predicated region
    $region38: #{tpu_custom_call.1} parent=1 // pred_check
      _
    $region39: #{tpu_custom_call.1} parent=1 // pred_check_branch
      %77 = sbr.rel (0) target = $region41
    $region40: #{tpu_custom_call.1} parent=1 // pred_region
      %78 = dma.done [#allocation6], 1024
    $region41: #{tpu_custom_call.1} parent=1 // pred_fallthru
      _
    // Predicated region
    $region42: #{tpu_custom_call.1} parent=1 // pred_check
      _
    $region43: #{tpu_custom_call.1} parent=1 // pred_check_branch
      %80 = sbr.rel (0) target = $region45
    $region44: #{tpu_custom_call.1} parent=1 // pred_region
      %81 = dma.done [#allocation6], 1024
    $region45: #{tpu_custom_call.1} parent=1 // pred_fallthru
      _
    // Predicated region
    $region46: #{tpu_custom_call.1} parent=1 // pred_check
      _
    $region47: #{tpu_custom_call.1} parent=1 // pred_check_branch
      %83 = sbr.rel (0) target = $region49
    $region48: #{tpu_custom_call.1} parent=1 // pred_region
      %84 = dma.done [#allocation9], 1024
    $region49: #{tpu_custom_call.1} parent=1 // pred_fallthru
      _
    %v86 = vld [vmem:[#allocation2] sm:$0xf]
    %v87 = vld [vmem:[#allocation2 + $0x4] sm:$0xf]
    %v88 = vld [vmem:[#allocation2 + $0x8] sm:$0xf]
    %v89 = vld [vmem:[#allocation2 + $0xc] sm:$0xf]
    %v90 = vld [vmem:[#allocation2 + $0x10] sm:$0xf]
    %v91 = vld [vmem:[#allocation2 + $0x14] sm:$0xf]
    %v92 = vld [vmem:[#allocation2 + $0x18] sm:$0xf]
    %v93 = vld [vmem:[#allocation2 + $0x1c] sm:$0xf]
    %v94 = vld [vmem:[#allocation5] sm:$0xf]
    %v95 = vld [vmem:[#allocation5 + $0x4] sm:$0xf]
    %v96 = vld [vmem:[#allocation5 + $0x8] sm:$0xf]
    %v97 = vld [vmem:[#allocation5 + $0xc] sm:$0xf]
    %v98 = vld [vmem:[#allocation5 + $0x10] sm:$0xf]
    %v99 = vld [vmem:[#allocation5 + $0x14] sm:$0xf]
    %v100 = vld [vmem:[#allocation5 + $0x18] sm:$0xf]
    %v101 = vld [vmem:[#allocation5 + $0x1c] sm:$0xf]
    %v102 = vld [vmem:[#allocation5 + $0x20] sm:$0xf]
    %v103 = vld [vmem:[#allocation5 + $0x24] sm:$0xf]
    %v104 = vld [vmem:[#allocation5 + $0x28] sm:$0xf]
    %v105 = vld [vmem:[#allocation5 + $0x2c] sm:$0xf]
    %v106 = vld [vmem:[#allocation5 + $0x30] sm:$0xf]
    %v107 = vld [vmem:[#allocation5 + $0x34] sm:$0xf]
    %v108 = vld [vmem:[#allocation5 + $0x38] sm:$0xf]
    %v109 = vld [vmem:[#allocation5 + $0x3c] sm:$0xf]
    %v110 = vld [vmem:[%s2] sm:$0x1]
    %v112 = vlaneseq
    %v113 = vshrl.u32 %v112, 7
    %v114 = vsub.s32 0, %v113
    %v115 = vrot.slane %v110, %v114
    %v125 = vunpack.c.l.b16 %v86
    %v126 = vunpack.c.l.b16 %v87
    %v127 = vunpack.c.l.b16 %v88
    %v128 = vunpack.c.l.b16 %v89
    %v129 = vunpack.c.l.b16 %v90
    %v130 = vunpack.c.l.b16 %v91
    %v131 = vunpack.c.l.b16 %v92
    %v132 = vunpack.c.l.b16 %v93
    %v133 = vpack.c.b16 %v126, %v125
    %v134 = vpack.c.b16 %v128, %v127
    %v135 = vpack.c.b16 %v130, %v129
    %v136 = vpack.c.b16 %v132, %v131
    %v157 = vunpack.c.l.b16 %v94
    %v158 = vunpack.c.l.b16 %v95
    %v159 = vunpack.c.l.b16 %v96
    %v160 = vunpack.c.l.b16 %v97
    %v161 = vunpack.c.l.b16 %v98
    %v162 = vunpack.c.l.b16 %v99
    %v163 = vunpack.c.l.b16 %v100
    %v164 = vunpack.c.l.b16 %v101
    %v165 = vunpack.c.l.b16 %v102
    %v166 = vunpack.c.l.b16 %v103
    %v167 = vunpack.c.l.b16 %v104
    %v168 = vunpack.c.l.b16 %v105
    %v169 = vunpack.c.l.b16 %v106
    %v170 = vunpack.c.l.b16 %v107
    %v171 = vunpack.c.l.b16 %v108
    %v172 = vunpack.c.l.b16 %v109
    %v173 = vpack.c.b16 %v158, %v157
    %v174 = vpack.c.b16 %v160, %v159
    %v175 = vpack.c.b16 %v162, %v161
    %v176 = vpack.c.b16 %v164, %v163
    %v177 = vpack.c.b16 %v166, %v165
    %v178 = vpack.c.b16 %v168, %v167
    %v179 = vpack.c.b16 %v170, %v169
    %v180 = vpack.c.b16 %v172, %v171
    %189 = vmatprep.subr.bf16.mxu0 0
    %190 = vmatpush1.bf16.msra.mxu0 %v173
    %191 = vmatprep.subr.bf16.mxu0 0
    %192 = vmatpush1.bf16.msra.mxu0 %v174
    %193 = vmatprep.subr.bf16.mxu0 0
    %194 = vmatpush1.bf16.msra.mxu0 %v175
    %195 = vmatprep.subr.bf16.mxu0 0
    %196 = vmatpush1.bf16.msra.mxu0 %v176
    %197 = vmatprep.subr.bf16.mxu0 0
    %198 = vmatpush1.bf16.msra.mxu0 %v177
    %199 = vmatprep.subr.bf16.mxu0 0
    %200 = vmatpush1.bf16.msra.mxu0 %v178
    %201 = vmatprep.subr.bf16.mxu0 0
    %202 = vmatpush1.bf16.msra.mxu0 %v179
    %203 = vmatprep.subr.bf16.mxu0 0
    %204 = vmatpush1.bf16.msra.mxu0 %v180
    %205 = vmatprep.subr.bf16.mxu0 0
    %206 = vmatpush1.bf16.msra.mxu0 0
    %207 = vmatprep.subr.bf16.mxu0 0
    %208 = vmatpush1.bf16.msra.mxu0 0
    %209 = vmatprep.subr.bf16.mxu0 0
    %210 = vmatpush1.bf16.msra.mxu0 0
    %211 = vmatprep.subr.bf16.mxu0 0
    %212 = vmatpush1.bf16.msra.mxu0 0
    %213 = vmatprep.subr.bf16.mxu0 0
    %214 = vmatpush1.bf16.msra.mxu0 0
    %215 = vmatprep.subr.bf16.mxu0 0
    %216 = vmatpush1.bf16.msra.mxu0 0
    %217 = vmatprep.subr.bf16.mxu0 0
    %218 = vmatpush1.bf16.msra.mxu0 0
    %219 = vmatprep.subr.bf16.mxu0 0
    %220 = vmatpush1.bf16.msra.mxu0 0
    %221 = vmatprep.mubr.bf16.mxu0 0
    %222 = vmatmul.mubr.bf16.gmra.mrb[0].mxu0 %v133
    %v223 = vpop.f32.mrb[0].mxu0
    %v224 = vadd.f32 %v115, %v223
    %v225 = vpop.f32.mrb[0].mxu0
    %v226 = vpop.f32.mrb[0].mxu0
    %v227 = vadd.f32 %v115, %v226
    %v228 = vpop.f32.mrb[0].mxu0
    %229 = vmatprep.mubr.bf16.mxu0 0
    %230 = vmatmul.mubr.bf16.gmra.mrb[0].mxu0 %v134
    %v231 = vpop.f32.mrb[0].mxu0
    %v232 = vadd.f32 %v115, %v231
    %v233 = vpop.f32.mrb[0].mxu0
    %v234 = vpop.f32.mrb[0].mxu0
    %v235 = vadd.f32 %v115, %v234
    %v236 = vpop.f32.mrb[0].mxu0
    %237 = vmatprep.mubr.bf16.mxu0 0
    %238 = vmatmul.mubr.bf16.gmra.mrb[0].mxu0 %v135
    %v239 = vpop.f32.mrb[0].mxu0
    %v240 = vadd.f32 %v115, %v239
    %v241 = vpop.f32.mrb[0].mxu0
    %v242 = vpop.f32.mrb[0].mxu0
    %v243 = vadd.f32 %v115, %v242
    %v244 = vpop.f32.mrb[0].mxu0
    %245 = vmatprep.mubr.bf16.mxu0 0
    %246 = vmatmul.mubr.bf16.gmra.mrb[0].mxu0 %v136
    %v247 = vpop.f32.mrb[0].mxu0
    %v248 = vadd.f32 %v115, %v247
    %v249 = vpop.f32.mrb[0].mxu0
    %v250 = vpop.f32.mrb[0].mxu0
    %v251 = vadd.f32 %v115, %v250
    %v252 = vpop.f32.mrb[0].mxu0
    %253 = vdwg.mxu0
    %v254 = vmax.f32 %v224, 0.0
    %v255 = vmax.f32 %v227, 0.0
    %v256 = vmax.f32 %v232, 0.0
    %v257 = vmax.f32 %v235, 0.0
    %v258 = vmax.f32 %v240, 0.0
    %v259 = vmax.f32 %v243, 0.0
    %v260 = vmax.f32 %v248, 0.0
    %v261 = vmax.f32 %v251, 0.0
    %v262 = vld [vmem:[%s3] sm:$0xff]
    %v263 = vadd.f32 %v254, %v262
    %v264 = vadd.f32 %v255, %v262
    %v265 = vadd.f32 %v256, %v262
    %v266 = vadd.f32 %v257, %v262
    %v267 = vadd.f32 %v258, %v262
    %v268 = vadd.f32 %v259, %v262
    %v269 = vadd.f32 %v260, %v262
    %v270 = vadd.f32 %v261, %v262
    %v271 = vrot.slane %v263, 4
    %v272 = vmax.f32 %v263, %v271
    %v273 = vrot.slane %v272, 2
    %v274 = vmax.f32 %v272, %v273
    %v275 = vrot.slane %v274, 1
    %v276 = vmax.f32 %v274, %v275
    %v277 = vrot.slane %v264, 4
    %v278 = vmax.f32 %v264, %v277
    %v279 = vrot.slane %v278, 2
    %v280 = vmax.f32 %v278, %v279
    %v281 = vrot.slane %v280, 1
    %v282 = vmax.f32 %v280, %v281
    %v283 = vrot.slane %v265, 4
    %v284 = vmax.f32 %v265, %v283
    %v285 = vrot.slane %v284, 2
    %v286 = vmax.f32 %v284, %v285
    %v287 = vrot.slane %v286, 1
    %v288 = vmax.f32 %v286, %v287
    %v289 = vrot.slane %v266, 4
    %v290 = vmax.f32 %v266, %v289
    %v291 = vrot.slane %v290, 2
    %v292 = vmax.f32 %v290, %v291
    %v293 = vrot.slane %v292, 1
    %v294 = vmax.f32 %v292, %v293
    %v295 = vrot.slane %v267, 4
    %v296 = vmax.f32 %v267, %v295
    %v297 = vrot.slane %v296, 2
    %v298 = vmax.f32 %v296, %v297
    %v299 = vrot.slane %v298, 1
    %v300 = vmax.f32 %v298, %v299
    %v301 = vrot.slane %v268, 4
    %v302 = vmax.f32 %v268, %v301
    %v303 = vrot.slane %v302, 2
    %v304 = vmax.f32 %v302, %v303
    %v305 = vrot.slane %v304, 1
    %v306 = vmax.f32 %v304, %v305
    %v307 = vrot.slane %v269, 4
    %v308 = vmax.f32 %v269, %v307
    %v309 = vrot.slane %v308, 2
    %v310 = vmax.f32 %v308, %v309
    %v311 = vrot.slane %v310, 1
    %v312 = vmax.f32 %v310, %v311
    %v313 = vrot.slane %v270, 4
    %v314 = vmax.f32 %v270, %v313
    %v315 = vrot.slane %v314, 2
    %v316 = vmax.f32 %v314, %v315
    %v317 = vrot.slane %v316, 1
    %v318 = vmax.f32 %v316, %v317
    %v319 = vpack.c.bf16 %v276, %v276
    %v320 = vpack.c.bf16 %v282, %v282
    %v321 = vpack.c.bf16 %v288, %v288
    %v322 = vpack.c.bf16 %v294, %v294
    %v323 = vpack.c.bf16 %v300, %v300
    %v324 = vpack.c.bf16 %v306, %v306
    %v325 = vpack.c.bf16 %v312, %v312
    %v326 = vpack.c.bf16 %v318, %v318
    %v327 = vld [vmem:[#allocation7] sm:$0xf]
    %v328 = vld [vmem:[#allocation7 + $0x4] sm:$0xf]
    %v329 = vld [vmem:[#allocation7 + $0x8] sm:$0xf]
    %v330 = vld [vmem:[#allocation7 + $0xc] sm:$0xf]
    %v331 = vld [vmem:[#allocation7 + $0x10] sm:$0xf]
    %v332 = vld [vmem:[#allocation7 + $0x14] sm:$0xf]
    %v333 = vld [vmem:[#allocation7 + $0x18] sm:$0xf]
    %v334 = vld [vmem:[#allocation7 + $0x1c] sm:$0xf]
    %v335 = vld [vmem:[#allocation7 + $0x20] sm:$0xf]
    %v336 = vld [vmem:[#allocation7 + $0x24] sm:$0xf]
    %v337 = vld [vmem:[#allocation7 + $0x28] sm:$0xf]
    %v338 = vld [vmem:[#allocation7 + $0x2c] sm:$0xf]
    %v339 = vld [vmem:[#allocation7 + $0x30] sm:$0xf]
    %v340 = vld [vmem:[#allocation7 + $0x34] sm:$0xf]
    %v341 = vld [vmem:[#allocation7 + $0x38] sm:$0xf]
    %v342 = vld [vmem:[#allocation7 + $0x3c] sm:$0xf]
    %v343 = vld [vmem:[%s5] sm:$0x1]
    %v345 = vlaneseq
    %v346 = vshrl.u32 %v345, 7
    %v347 = vsub.s32 0, %v346
    %v348 = vrot.slane %v343, %v347
    %v358 = vunpack.c.l.b16 %v319
    %v359 = vunpack.c.l.b16 %v320
    %v360 = vunpack.c.l.b16 %v321
    %v361 = vunpack.c.l.b16 %v322
    %v362 = vunpack.c.l.b16 %v323
    %v363 = vunpack.c.l.b16 %v324
    %v364 = vunpack.c.l.b16 %v325
    %v365 = vunpack.c.l.b16 %v326
    %vm366 = vcmask 1041409
    %v367 = vsel %vm366, %v359, %v358
    %vm368 = vcmask 1042434
    %v369 = vsel %vm368, %v360, %v367
    %vm370 = vcmask 1043459
    %v371 = vsel %vm370, %v361, %v369
    %vm372 = vcmask 1044484
    %v373 = vsel %vm372, %v362, %v371
    %vm374 = vcmask 1045509
    %v375 = vsel %vm374, %v363, %v373
    %vm376 = vcmask 1046534
    %v377 = vsel %vm376, %v364, %v375
    %vm378 = vcmask 1047559
    %v379 = vsel %vm378, %v365, %v377
    %v380 = vpack.c.b16 %v379, %v379
    %v398 = vunpack.c.l.b16 %v327
    %v399 = vunpack.c.l.b16 %v328
    %v400 = vunpack.c.l.b16 %v329
    %v401 = vunpack.c.l.b16 %v330
    %v402 = vunpack.c.l.b16 %v331
    %v403 = vunpack.c.l.b16 %v332
    %v404 = vunpack.c.l.b16 %v333
    %v405 = vunpack.c.l.b16 %v334
    %v406 = vunpack.c.l.b16 %v335
    %v407 = vunpack.c.l.b16 %v336
    %v408 = vunpack.c.l.b16 %v337
    %v409 = vunpack.c.l.b16 %v338
    %v410 = vunpack.c.l.b16 %v339
    %v411 = vunpack.c.l.b16 %v340
    %v412 = vunpack.c.l.b16 %v341
    %v413 = vunpack.c.l.b16 %v342
    %v414 = vpack.c.b16 %v399, %v398
    %v415 = vpack.c.b16 %v401, %v400
    %v416 = vpack.c.b16 %v403, %v402
    %v417 = vpack.c.b16 %v405, %v404
    %v418 = vpack.c.b16 %v407, %v406
    %v419 = vpack.c.b16 %v409, %v408
    %v420 = vpack.c.b16 %v411, %v410
    %v421 = vpack.c.b16 %v413, %v412
    %430 = vmatprep.subr.bf16.mxu0 0
    %431 = vmatpush1.bf16.msra.mxu0 %v414
    %432 = vmatprep.subr.bf16.mxu0 0
    %433 = vmatpush1.bf16.msra.mxu0 %v415
    %434 = vmatprep.subr.bf16.mxu0 0
    %435 = vmatpush1.bf16.msra.mxu0 %v416
    %436 = vmatprep.subr.bf16.mxu0 0
    %437 = vmatpush1.bf16.msra.mxu0 %v417
    %438 = vmatprep.subr.bf16.mxu0 0
    %439 = vmatpush1.bf16.msra.mxu0 %v418
    %440 = vmatprep.subr.bf16.mxu0 0
    %441 = vmatpush1.bf16.msra.mxu0 %v419
    %442 = vmatprep.subr.bf16.mxu0 0
    %443 = vmatpush1.bf16.msra.mxu0 %v420
    %444 = vmatprep.subr.bf16.mxu0 0
    %445 = vmatpush1.bf16.msra.mxu0 %v421
    %446 = vmatprep.subr.bf16.mxu0 0
    %447 = vmatpush1.bf16.msra.mxu0 0
    %448 = vmatprep.subr.bf16.mxu0 0
    %449 = vmatpush1.bf16.msra.mxu0 0
    %450 = vmatprep.subr.bf16.mxu0 0
    %451 = vmatpush1.bf16.msra.mxu0 0
    %452 = vmatprep.subr.bf16.mxu0 0
    %453 = vmatpush1.bf16.msra.mxu0 0
    %454 = vmatprep.subr.bf16.mxu0 0
    %455 = vmatpush1.bf16.msra.mxu0 0
    %456 = vmatprep.subr.bf16.mxu0 0
    %457 = vmatpush1.bf16.msra.mxu0 0
    %458 = vmatprep.subr.bf16.mxu0 0
    %459 = vmatpush1.bf16.msra.mxu0 0
    %460 = vmatprep.subr.bf16.mxu0 0
    %461 = vmatpush1.bf16.msra.mxu0 0
    %462 = vmatprep.mubr.bf16.mxu0 0
    %463 = vmatmul.mubr.bf16.gmra.mrb[0].mxu0 %v380
    %v464 = vpop.f32.mrb[0].mxu0
    %v465 = vadd.f32 %v348, %v464
    %v466 = vpop.f32.mrb[0].mxu0
    %v467 = vpop.f32.mrb[0].mxu0
    %v468 = vpop.f32.mrb[0].mxu0
    %469 = vdwg.mxu0
    %v470 = vmax.f32 %v465, 0.0
    %v471 = vpack.c.bf16 %v470, %v470
    %v472 = vld [vmem:[#allocation8] sm:$0xf]
    %v473 = vld [vmem:[#allocation8 + $0x4] sm:$0xf]
    %v474 = vld [vmem:[#allocation8 + $0x8] sm:$0xf]
    %v475 = vld [vmem:[#allocation8 + $0xc] sm:$0xf]
    %v476 = vld [vmem:[#allocation8 + $0x10] sm:$0xf]
    %v477 = vld [vmem:[#allocation8 + $0x14] sm:$0xf]
    %v478 = vld [vmem:[#allocation8 + $0x18] sm:$0xf]
    %v479 = vld [vmem:[#allocation8 + $0x1c] sm:$0xf]
    %v480 = vld [vmem:[#allocation8 + $0x20] sm:$0xf]
    %v481 = vld [vmem:[#allocation8 + $0x24] sm:$0xf]
    %v482 = vld [vmem:[#allocation8 + $0x28] sm:$0xf]
    %v483 = vld [vmem:[#allocation8 + $0x2c] sm:$0xf]
    %v484 = vld [vmem:[#allocation8 + $0x30] sm:$0xf]
    %v485 = vld [vmem:[#allocation8 + $0x34] sm:$0xf]
    %v486 = vld [vmem:[#allocation8 + $0x38] sm:$0xf]
    %v487 = vld [vmem:[#allocation8 + $0x3c] sm:$0xf]
    %v488 = vld [vmem:[%s7] sm:$0x1]
    %v490 = vlaneseq
    %v491 = vshrl.u32 %v490, 7
    %v492 = vsub.s32 0, %v491
    %v493 = vrot.slane %v488, %v492
    %v511 = vunpack.c.l.b16 %v472
    %v512 = vunpack.c.l.b16 %v473
    %v513 = vunpack.c.l.b16 %v474
    %v514 = vunpack.c.l.b16 %v475
    %v515 = vunpack.c.l.b16 %v476
    %v516 = vunpack.c.l.b16 %v477
    %v517 = vunpack.c.l.b16 %v478
    %v518 = vunpack.c.l.b16 %v479
    %v519 = vunpack.c.l.b16 %v480
    %v520 = vunpack.c.l.b16 %v481
    %v521 = vunpack.c.l.b16 %v482
    %v522 = vunpack.c.l.b16 %v483
    %v523 = vunpack.c.l.b16 %v484
    %v524 = vunpack.c.l.b16 %v485
    %v525 = vunpack.c.l.b16 %v486
    %v526 = vunpack.c.l.b16 %v487
    %v527 = vpack.c.b16 %v512, %v511
    %v528 = vpack.c.b16 %v514, %v513
    %v529 = vpack.c.b16 %v516, %v515
    %v530 = vpack.c.b16 %v518, %v517
    %v531 = vpack.c.b16 %v520, %v519
    %v532 = vpack.c.b16 %v522, %v521
    %v533 = vpack.c.b16 %v524, %v523
    %v534 = vpack.c.b16 %v526, %v525
    %543 = vmatprep.subr.bf16.mxu0 0
    %544 = vmatpush1.bf16.msra.mxu0 %v527
    %545 = vmatprep.subr.bf16.mxu0 0
    %546 = vmatpush1.bf16.msra.mxu0 %v528
    %547 = vmatprep.subr.bf16.mxu0 0
    %548 = vmatpush1.bf16.msra.mxu0 %v529
    %549 = vmatprep.subr.bf16.mxu0 0
    %550 = vmatpush1.bf16.msra.mxu0 %v530
    %551 = vmatprep.subr.bf16.mxu0 0
    %552 = vmatpush1.bf16.msra.mxu0 %v531
    %553 = vmatprep.subr.bf16.mxu0 0
    %554 = vmatpush1.bf16.msra.mxu0 %v532
    %555 = vmatprep.subr.bf16.mxu0 0
    %556 = vmatpush1.bf16.msra.mxu0 %v533
    %557 = vmatprep.subr.bf16.mxu0 0
    %558 = vmatpush1.bf16.msra.mxu0 %v534
    %559 = vmatprep.subr.bf16.mxu0 0
    %560 = vmatpush1.bf16.msra.mxu0 0
    %561 = vmatprep.subr.bf16.mxu0 0
    %562 = vmatpush1.bf16.msra.mxu0 0
    %563 = vmatprep.subr.bf16.mxu0 0
    %564 = vmatpush1.bf16.msra.mxu0 0
    %565 = vmatprep.subr.bf16.mxu0 0
    %566 = vmatpush1.bf16.msra.mxu0 0
    %567 = vmatprep.subr.bf16.mxu0 0
    %568 = vmatpush1.bf16.msra.mxu0 0
    %569 = vmatprep.subr.bf16.mxu0 0
    %570 = vmatpush1.bf16.msra.mxu0 0
    %571 = vmatprep.subr.bf16.mxu0 0
    %572 = vmatpush1.bf16.msra.mxu0 0
    %573 = vmatprep.subr.bf16.mxu0 0
    %574 = vmatpush1.bf16.msra.mxu0 0
    %575 = vmatprep.mubr.bf16.mxu0 0
    %576 = vmatmul.mubr.bf16.gmra.mrb[0].mxu0 %v471
    %v577 = vpop.f32.mrb[0].mxu0
    %v578 = vadd.f32 %v493, %v577
    %v579 = vpop.f32.mrb[0].mxu0
    %v580 = vpop.f32.mrb[0].mxu0
    %v581 = vpop.f32.mrb[0].mxu0
    %582 = vdwg.mxu0
    %583 = vst [vmem:[#allocation10] sm:$0xff] %v578
    // Predicated region
    $region50: #{tpu_custom_call.1} parent=1 // pred_check
      _
    $region51: #{tpu_custom_call.1} parent=1 // pred_check_branch
      %585 = sbr.rel (0) target = $region53
    $region52: #{tpu_custom_call.1} parent=1 // pred_region
      %s587 = ssub.s32 128, 128
      %588 = vsyncadd [#allocation4], %s587
      %s590 = sshll.u32 [#allocation10], 4
      %s591 = int_to_ptr.vmem [resolvable:$true] %s590
      %593 = dma.vmem_to_hbm [thread:$0]  %s591, 128, %s8, [#allocation4]
    $region53: #{tpu_custom_call.1} parent=1 // pred_fallthru
      _
    // Predicated region
    $region54: #{tpu_custom_call.1} parent=1 // pred_check
      _
    $region55: #{tpu_custom_call.1} parent=1 // pred_check_branch
      %595 = sbr.rel (0) target = $region57
    $region56: #{tpu_custom_call.1} parent=1 // pred_region
      %596 = dma.done [#allocation4], 128
    $region57: #{tpu_custom_call.1} parent=1 // pred_fallthru
      _
    %597 = vsyncpa [#allocation3], 1
    %598 = vsyncpa [#allocation6], 1
    %599 = vsyncpa [#allocation9], 1
    %600 = vsyncpa [#allocation4], 1

</llo_original>
